<compile_context>
chip_gen: v7x
topology: tpu7x:2x2x1
jax: 0.10.0
libtpu: 0.0.40
codegen_flags: <defaults>
</compile_context>

<pallas_src>
import functools

import jax
import jax.numpy as jnp
from jax.experimental import pallas as pl
from jax.experimental.pallas import tpu as pltpu


def _item_tower_kernel(e_ref, w1_ref, b1_ref, w2_ref, b2_ref, out_ref, *,
                       quantize_hidden):
    # e_ref : (TR, pack*D)        w1_ref: (D, H0)            b1_ref: (1, H0)
    # w2_ref: (pack*H0, pack*H1)  b2_ref: (1, pack*H1)       out_ref: (TR, pack*H1)
    d, h0 = w1_ref.shape
    pack = e_ref.shape[1] // d

    x = e_ref[...]
    w1 = w1_ref[...]
    b1 = b1_ref[...]

    # One K=D matmul per packed slot against the NATURAL-shape W1 (no
    # block-diag structural zeros).  Each hidden half is H0 = 128 lanes wide,
    # so the concatenation lands exactly on vreg lane boundaries.
    halves = []
    for p in range(pack):
        xp = x[:, p * d:(p + 1) * d]
        hp = jnp.dot(xp, w1, preferred_element_type=jnp.float32) + b1
        halves.append(jnp.maximum(hp, 0.0))
    h = halves[0] if pack == 1 else jnp.concatenate(halves, axis=-1)

    if quantize_hidden:
        # Optional extra quantization (native bf16 MXU on the 2nd matmul).
        # Off by default: the reference being matched only quantizes params.
        h = h.astype(w2_ref.dtype)

    o = jnp.dot(h, w2_ref[...], preferred_element_type=jnp.float32) + b2_ref[...]
    out_ref[...] = jnp.maximum(o, 0.0).astype(out_ref.dtype)


def _round_up(x, m):
    return ((x + m - 1) // m) * m


def _block_diag(w, pack):
    """[[W,0,...],[0,W,...],...] with `pack` copies of W on the diagonal."""
    if pack == 1:
        return w
    kin, kout = w.shape
    out = jnp.zeros((pack * kin, pack * kout), w.dtype)
    for p in range(pack):
        out = out.at[p * kin:(p + 1) * kin, p * kout:(p + 1) * kout].set(w)
    return out


def _default_min_grid_steps():
    # v7x has 2 TensorCores per chip -> give each one a tile.  v5e/v6e are
    # single-TC: extra grid steps are pure per-step (~0.35us) overhead.
    try:
        kind = jax.devices()[0].device_kind.lower()
    except Exception:  # pragma: no cover - no accelerator visible
        return 1
    return 2 if "v7" in kind else 1


def build_item_tower(emb_table, w1, b1, w2, b2, *,
                     param_dtype=jnp.bfloat16,
                     out_dtype=jnp.float32,
                     quantize_hidden=False,
                     tile_m=None, min_grid_steps=None, max_tile_m=8192):
    """One-time operand packing + kernel construction for ItemTower.forward().

    emb_table: (num_items, D) f32;  w1: (D, H0);  b1: (H0,);  w2: (H0, H1);  b2: (H1,)
    param_dtype: storage dtype for E/W1/W2.  bf16 is recommended on ALL
      generations (halves HBM traffic; all math/accumulation stays f32, so it
      is v5e-safe).  Use f32 for an exact match of an f32 model.
    Returns (operands, forward) where forward(*operands) -> (num_items, H1).
    Packing happens exactly once here; the jitted forward only runs the kernel.
    """
    num_items, d = emb_table.shape
    h0 = w1.shape[1]
    h1 = w2.shape[1]
    if min_grid_steps is None:
        min_grid_steps = _default_min_grid_steps()

    # Pack `pack` consecutive items per 128-lane row when the feature dims are
    # narrower than a vreg (D = H1 = 64 -> pack = 2 -> fully lane-dense I/O).
    pack = 1
    if d < 128 and h1 < 128 and 128 % d == 0 and 128 % h1 == 0:
        pack = min(128 // d, 128 // h1)

    cdt = jnp.dtype(param_dtype)
    odt = jnp.dtype(out_dtype)
    # bf16 (sub-32-bit) tiles at (16,128) sublanes x lanes; f32 at (8,128).
    sublane = 16 if (cdt.itemsize < 4 or odt.itemsize < 4) else 8
    row_align = sublane * pack  # in ITEMS

    if tile_m is None:
        tile_m = (num_items + min_grid_steps - 1) // min_grid_steps
    tile_m = min(max_tile_m, tile_m)
    tile_m = max(row_align, _round_up(tile_m, row_align))
    grid_m = (num_items + tile_m - 1) // tile_m
    padded_n = grid_m * tile_m

    # ---------- one-time operand packing (NOT redone per forward call) ------
    e = emb_table.astype(cdt)
    if padded_n != num_items:
        # NOTE: padded rows produce relu(relu(b1) @ W2 + b2) != 0.  They are
        # sliced off below; never read them downstream.
        e = jnp.zeros((padded_n, d), cdt).at[:num_items].set(e)
    e_packed = e.reshape(padded_n // pack, pack * d)        # free row-major reshape

    w1c = w1.astype(cdt)                                     # natural (D, H0)
    w2p = _block_diag(w2.astype(cdt), pack)                  # (pack*H0, pack*H1)
    b1r = b1.astype(jnp.float32).reshape(1, h0)              # f32 bias
    b2p = jnp.tile(b2.astype(jnp.float32), pack).reshape(1, pack * h1)
    operands = tuple(jax.device_put(a) for a in (e_packed, w1c, b1r, w2p, b2p))

    rows = padded_n // pack
    tile_rows = tile_m // pack

    flops = 2 * padded_n * d * h0 + 2 * padded_n * pack * h0 * h1
    bytes_accessed = (sum(int(a.size) * a.dtype.itemsize for a in operands)
                      + rows * pack * h1 * odt.itemsize)

    kernel = functools.partial(_item_tower_kernel, quantize_hidden=quantize_hidden)

    call = pl.pallas_call(
        kernel,
        out_shape=jax.ShapeDtypeStruct((rows, pack * h1), odt),
        grid_spec=pltpu.PrefetchScalarGridSpec(
            num_scalar_prefetch=0,
            grid=(grid_m,),
            in_specs=[
                pl.BlockSpec((tile_rows, pack * d), lambda i: (i, 0)),   # packed items
                pl.BlockSpec((d, h0), lambda i: (0, 0)),                 # W1 (natural)
                pl.BlockSpec((1, h0), lambda i: (0, 0)),                 # b1
                pl.BlockSpec((pack * h0, pack * h1), lambda i: (0, 0)),  # W2 (block-diag)
                pl.BlockSpec((1, pack * h1), lambda i: (0, 0)),          # b2
            ],
            out_specs=pl.BlockSpec((tile_rows, pack * h1), lambda i: (i, 0)),
        ),
        # On v7x, switch this axis to pltpu.CORE_PARALLEL if plain "parallel"
        # does not shard the 2-step grid across the two TensorCores.
        compiler_params=pltpu.CompilerParams(dimension_semantics=("parallel",)),
        cost_estimate=pl.CostEstimate(
            flops=flops, transcendentals=0, bytes_accessed=bytes_accessed),
    )

    def forward(e_packed, w1c, b1r, w2p, b2p):
        out_packed = call(e_packed, w1c, b1r, w2p, b2p)
        # (padded_N/pack, pack*H1) -> (padded_N, H1) is a free row-major
        # reshape; then slice off the padded garbage rows.
        return out_packed.reshape(padded_n, h1)[:num_items]

    return operands, jax.jit(forward)


def item_tower_forward(emb_table, w1, b1, w2, b2, **kwargs):
    """One-shot convenience wrapper (packs + runs once)."""
    operands, forward = build_item_tower(emb_table, w1, b1, w2, b2, **kwargs)
    return forward(*operands)


def item_tower_reference(emb_table, w1, b1, w2, b2):
    h = jnp.maximum(emb_table @ w1 + b1, 0.0)
    return jnp.maximum(h @ w2 + b2, 0.0)


if __name__ == "__main__":
    embedding_dim = 64
    hidden_units = [128, 64]
    num_items = 500   # matches the module exactly; wrapper handles padding

    key = jax.random.PRNGKey(0)
    k_emb, k_w1, k_b1, k_w2, k_b2 = jax.random.split(key, 5)

    emb_table = jax.random.normal(k_emb, (num_items, embedding_dim), jnp.float32)
    w1 = jax.random.normal(k_w1, (embedding_dim, hidden_units[0]), jnp.float32) * 0.1
    b1 = jax.random.normal(k_b1, (hidden_units[0],), jnp.float32) * 0.1
    w2 = jax.random.normal(k_w2, (hidden_units[0], hidden_units[1]), jnp.float32) * 0.1
    b2 = jax.random.normal(k_b2, (hidden_units[1],), jnp.float32) * 0.1

    # f32 storage path: tight check against the XLA reference.
    ops_f32, fwd_f32 = build_item_tower(emb_table, w1, b1, w2, b2,
                                        param_dtype=jnp.float32)
    out = jax.block_until_ready(fwd_f32(*ops_f32))
    ref = item_tower_reference(emb_table, w1, b1, w2, b2)
    assert out.shape == (num_items, hidden_units[1])
    assert jnp.allclose(out, ref, atol=1e-3, rtol=1e-3), "f32 mismatch vs reference"

    # Default bf16 parameter storage (recommended on v5e/v6e/v7x): params are
    # quantized once; hidden/bias/accumulation stay f32 (quantize_hidden=False).
    ops_bf16, fwd_bf16 = build_item_tower(emb_table, w1, b1, w2, b2)
    out_bf16 = jax.block_until_ready(fwd_bf16(*ops_bf16))
    ref_bf16 = item_tower_reference(
        emb_table.astype(jnp.bfloat16).astype(jnp.float32),
        w1.astype(jnp.bfloat16).astype(jnp.float32), b1,
        w2.astype(jnp.bfloat16).astype(jnp.float32), b2)
    assert out_bf16.shape == (num_items, hidden_units[1])
    assert jnp.allclose(out_bf16, ref_bf16, atol=2e-2, rtol=2e-2), \
        "bf16 mismatch vs reference"

    # Second call re-uses the cached packed operands (no re-packing work).
    out_again = jax.block_until_ready(fwd_bf16(*ops_bf16))
    assert jnp.array_equal(out_again, out_bf16)

    print("KERNEL_OK")
</pallas_src>

<mosaic_0001>
module attributes {stable_mosaic.version = 11 : i64} {
  func.func @_item_tower_kernel(%arg0: i32, %arg1: memref<256x128xf32, #tpu.memory_space<vmem>>, %arg2: memref<64x128xf32, #tpu.memory_space<vmem>>, %arg3: memref<1x128xf32, #tpu.memory_space<vmem>>, %arg4: memref<256x128xf32, #tpu.memory_space<vmem>>, %arg5: memref<1x128xf32, #tpu.memory_space<vmem>>, %arg6: memref<256x128xf32, #tpu.memory_space<vmem>>) attributes {dimension_semantics = [#tpu.dimension_semantics<parallel>], iteration_bounds = array<i64: 1>, scalar_prefetch = 0 : i64, scratch_operands = 0 : i64, tpu.core_type = #tpu.core_type<tc>, window_params = [{transform_indices = @transform_0, window_bounds = array<i64: 256, 128>}, {pipeline_mode = #tpu.pipeline_mode<synchronous>, transform_indices = @transform_1, window_bounds = array<i64: 64, 128>}, {pipeline_mode = #tpu.pipeline_mode<synchronous>, transform_indices = @transform_2, window_bounds = array<i64: 1, 128>}, {pipeline_mode = #tpu.pipeline_mode<synchronous>, transform_indices = @transform_3, window_bounds = array<i64: 256, 128>}, {pipeline_mode = #tpu.pipeline_mode<synchronous>, transform_indices = @transform_4, window_bounds = array<i64: 1, 128>}, {transform_indices = @transform_5, window_bounds = array<i64: 256, 128>}]} {
    %c0 = arith.constant 0 : index
    %c0_0 = arith.constant 0 : index
    %0 = vector.load %arg1[%c0, %c0_0] : memref<256x128xf32, #tpu.memory_space<vmem>>, vector<256x128xf32>
    %c0_1 = arith.constant 0 : index
    %c0_2 = arith.constant 0 : index
    %1 = vector.load %arg2[%c0_1, %c0_2] : memref<64x128xf32, #tpu.memory_space<vmem>>, vector<64x128xf32>
    %c0_3 = arith.constant 0 : index
    %c0_4 = arith.constant 0 : index
    %2 = vector.load %arg3[%c0_3, %c0_4] : memref<1x128xf32, #tpu.memory_space<vmem>>, vector<1x128xf32>
    %3 = vector.extract_strided_slice %0 {offsets = [0, 0], sizes = [256, 64], strides = [1, 1]} : vector<256x128xf32> to vector<256x64xf32>
    %cst = arith.constant dense<0.000000e+00> : vector<256x128xf32>
    %4 = tpu.matmul %3, %1, %cst {dimension_numbers = #tpu.dot_dimension_numbers<[1], [0], [0], [1], [0, 0, 1, 1], [], []>} : vector<256x64xf32>, vector<64x128xf32>, vector<256x128xf32> -> vector<256x128xf32>
    %5 = vector.broadcast %2 : vector<1x128xf32> to vector<256x128xf32>
    %6 = arith.addf %4, %5 : vector<256x128xf32>
    %cst_5 = arith.constant 0.000000e+00 : f32
    %7 = vector.broadcast %cst_5 : f32 to vector<256x128xf32>
    %8 = arith.maximumf %6, %7 : vector<256x128xf32>
    %9 = vector.extract_strided_slice %0 {offsets = [0, 64], sizes = [256, 64], strides = [1, 1]} : vector<256x128xf32> to vector<256x64xf32>
    %cst_6 = arith.constant dense<0.000000e+00> : vector<256x128xf32>
    %10 = tpu.matmul %9, %1, %cst_6 {dimension_numbers = #tpu.dot_dimension_numbers<[1], [0], [0], [1], [0, 0, 1, 1], [], []>} : vector<256x64xf32>, vector<64x128xf32>, vector<256x128xf32> -> vector<256x128xf32>
    %11 = vector.broadcast %2 : vector<1x128xf32> to vector<256x128xf32>
    %12 = arith.addf %10, %11 : vector<256x128xf32>
    %cst_7 = arith.constant 0.000000e+00 : f32
    %13 = vector.broadcast %cst_7 : f32 to vector<256x128xf32>
    %14 = arith.maximumf %12, %13 : vector<256x128xf32>
    %15 = tpu.concatenate %8, %14 in 1 : vector<256x128xf32>, vector<256x128xf32> -> vector<256x256xf32>
    %c0_8 = arith.constant 0 : index
    %c0_9 = arith.constant 0 : index
    %16 = vector.load %arg4[%c0_8, %c0_9] : memref<256x128xf32, #tpu.memory_space<vmem>>, vector<256x128xf32>
    %cst_10 = arith.constant dense<0.000000e+00> : vector<256x128xf32>
    %17 = tpu.matmul %15, %16, %cst_10 {dimension_numbers = #tpu.dot_dimension_numbers<[1], [0], [0], [1], [0, 0, 1, 1], [], []>} : vector<256x256xf32>, vector<256x128xf32>, vector<256x128xf32> -> vector<256x128xf32>
    %c0_11 = arith.constant 0 : index
    %c0_12 = arith.constant 0 : index
    %18 = vector.load %arg5[%c0_11, %c0_12] : memref<1x128xf32, #tpu.memory_space<vmem>>, vector<1x128xf32>
    %19 = vector.broadcast %18 : vector<1x128xf32> to vector<256x128xf32>
    %20 = arith.addf %17, %19 : vector<256x128xf32>
    %cst_13 = arith.constant 0.000000e+00 : f32
    %21 = vector.broadcast %cst_13 : f32 to vector<256x128xf32>
    %22 = arith.maximumf %20, %21 : vector<256x128xf32>
    %c0_14 = arith.constant 0 : index
    %c0_15 = arith.constant 0 : index
    %23 = vector.load %arg6[%c0_14, %c0_15] : memref<256x128xf32, #tpu.memory_space<vmem>>, vector<256x128xf32>
    tpu.vector_store %arg6[%c0_14, %c0_15], %22 {strides = array<i32>} : memref<256x128xf32, #tpu.memory_space<vmem>>, vector<256x128xf32>,
    return
  }
  func.func @transform_0(%arg0: i32) -> (i32, i32) {
    %c0_i32 = arith.constant 0 : i32
    %c0_i32_0 = arith.constant 0 : i32
    return %arg0, %c0_i32 : i32, i32
  }
  func.func @transform_1(%arg0: i32) -> (i32, i32) {
    %c0_i32 = arith.constant 0 : i32
    %c0_i32_0 = arith.constant 0 : i32
    %c0_i32_1 = arith.constant 0 : i32
    return %c0_i32, %c0_i32_0 : i32, i32
  }
  func.func @transform_2(%arg0: i32) -> (i32, i32) {
    %c0_i32 = arith.constant 0 : i32
    %c0_i32_0 = arith.constant 0 : i32
    %c0_i32_1 = arith.constant 0 : i32
    return %c0_i32, %c0_i32_0 : i32, i32
  }
  func.func @transform_3(%arg0: i32) -> (i32, i32) {
    %c0_i32 = arith.constant 0 : i32
    %c0_i32_0 = arith.constant 0 : i32
    %c0_i32_1 = arith.constant 0 : i32
    return %c0_i32, %c0_i32_0 : i32, i32
  }
  func.func @transform_4(%arg0: i32) -> (i32, i32) {
    %c0_i32 = arith.constant 0 : i32
    %c0_i32_0 = arith.constant 0 : i32
    %c0_i32_1 = arith.constant 0 : i32
    return %c0_i32, %c0_i32_0 : i32, i32
  }
  func.func @transform_5(%arg0: i32) -> (i32, i32) {
    %c0_i32 = arith.constant 0 : i32
    %c0_i32_0 = arith.constant 0 : i32
    return %arg0, %c0_i32 : i32, i32
  }
}

</mosaic_0001>

<llo_original>
// kernel: forward.1
$region0: #{forward.1}
  #allocation0 [shape = 'u32[]', space=smem, size = 0x4, offset = 0x4, fixed_abs, tag = 'smem constant byte address 0x4 - core index']
  #allocation1 [shape = 'u32[144,128]{1,0:T(1,128)}', space=vmem, size = 0x12000, scoped, tag = 'internal scratch']
  %s0 = inlined_call_operand.hbm [shape: f32[256,128], index: 0, kind: input, shape index: {}]
  %s1 = inlined_call_operand.hbm [shape: f32[64,128], index: 1, kind: input, shape index: {}]
  %s2 = inlined_call_operand.vmem [shape: f32[1,128], index: 2, kind: input, shape index: {}]
  %s3 = inlined_call_operand.hbm [shape: f32[256,128], index: 3, kind: input, shape index: {}]
  %s4 = inlined_call_operand.vmem [shape: f32[1,128], index: 4, kind: input, shape index: {}]
  %s5 = inlined_call_operand.vmem [shape: f32[256,128], index: 5, kind: output, shape index: {}]
  %s6 = sld [smem:[#allocation0]]
  $region42: #{forward.1} parent=0
    _
  %s8 = ssub.s32 1, %s6
  %s9 = scalar_select 0, %s8, %s6
  $region1: #{forward.1} parent=0
    #allocation2 [shape = 'u8[131072]{0}', space=vmem, size = 0x20000, scoped, tag = 'input window, operand 0, single buffered']
    #allocation3 [shape = 's32[1]{0}', space=sflag, size = 0x4, scoped, tag = 'scoped memory for forward.1']
    #allocation4 [shape = 'u8[32768]{0}', space=vmem, size = 0x8000, scoped, tag = 'input window, operand 1, single buffered']
    #allocation5 [shape = 's32[1]{0}', space=sflag, size = 0x4, scoped, tag = 'scoped memory for forward.1']
    #allocation6 [shape = 'u8[131072]{0}', space=vmem, size = 0x20000, scoped, tag = 'input window, operand 3, single buffered']
    %10 = vsyncpa [#allocation3], 0
    %11 = vsyncpa [#allocation5], 0
    // Predicated region
    $region2: #{forward.1} parent=1 // pred_check
      _
    $region3: #{forward.1} parent=1 // pred_check_branch
      %13 = sbr.rel (0) target = $region5
    $region4: #{forward.1} parent=1 // pred_region
      %s15 = ssub.s32 4096, 4096
      %16 = vsyncadd [#allocation3], %s15
      %s17 = sshll.u32 [#allocation2], 4
      %s18 = int_to_ptr.vmem [resolvable:$true] %s17
      %23 = dma.hbm_to_vmem [thread:$0]  %s0, 4096, %s18, [#allocation3], 128, 128, 8
    $region5: #{forward.1} parent=1 // pred_fallthru
      _
    // Predicated region
    $region6: #{forward.1} parent=1 // pred_check
      _
    $region7: #{forward.1} parent=1 // pred_check_branch
      %25 = sbr.rel (0) target = $region9
    $region8: #{forward.1} parent=1 // pred_region
      %s27 = ssub.s32 1024, 1024
      %28 = vsyncadd [#allocation5], %s27
      %s29 = sshll.u32 [#allocation4], 4
      %s30 = int_to_ptr.vmem [resolvable:$true] %s29
      %35 = dma.hbm_to_vmem [thread:$0]  %s1, 1024, %s30, [#allocation5], 128, 128, 8
    $region9: #{forward.1} parent=1 // pred_fallthru
      _
    // Predicated region
    $region10: #{forward.1} parent=1 // pred_check
      _
    $region11: #{forward.1} parent=1 // pred_check_branch
      %37 = sbr.rel (0) target = $region13
    $region12: #{forward.1} parent=1 // pred_region
      _
    $region13: #{forward.1} parent=1 // pred_fallthru
      _
    // Predicated region
    $region14: #{forward.1} parent=1 // pred_check
      _
    $region15: #{forward.1} parent=1 // pred_check_branch
      %39 = sbr.rel (0) target = $region17
    $region16: #{forward.1} parent=1 // pred_region
      %s41 = ssub.s32 4096, 4096
      %42 = vsyncadd [#allocation5], %s41
      %s43 = sshll.u32 [#allocation6], 4
      %s44 = int_to_ptr.vmem [resolvable:$true] %s43
      %49 = dma.hbm_to_vmem [thread:$0]  %s3, 4096, %s44, [#allocation5], 128, 128, 8
    $region17: #{forward.1} parent=1 // pred_fallthru
      _
    // Predicated region
    $region18: #{forward.1} parent=1 // pred_check
      _
    $region19: #{forward.1} parent=1 // pred_check_branch
      %51 = sbr.rel (0) target = $region21
    $region20: #{forward.1} parent=1 // pred_region
      _
    $region21: #{forward.1} parent=1 // pred_fallthru
      _
    // Predicated region
    $region22: #{forward.1} parent=1 // pred_check
      _
    $region23: #{forward.1} parent=1 // pred_check_branch
      %53 = sbr.rel (0) target = $region25
    $region24: #{forward.1} parent=1 // pred_region
      %54 = dma.done [#allocation3], 4096
    $region25: #{forward.1} parent=1 // pred_fallthru
      _
    // Predicated region
    $region26: #{forward.1} parent=1 // pred_check
      _
    $region27: #{forward.1} parent=1 // pred_check_branch
      %56 = sbr.rel (0) target = $region29
    $region28: #{forward.1} parent=1 // pred_region
      %57 = dma.done [#allocation5], 1024
    $region29: #{forward.1} parent=1 // pred_fallthru
      _
    // Predicated region
    $region30: #{forward.1} parent=1 // pred_check
      _
    $region31: #{forward.1} parent=1 // pred_check_branch
      %59 = sbr.rel (0) target = $region33
    $region32: #{forward.1} parent=1 // pred_region
      %60 = dma.done [#allocation5], 4096
    $region33: #{forward.1} parent=1 // pred_fallthru
      _
    %v61 = vld [vmem:[#allocation2] sm:$0xff]
    %v62 = vld [vmem:[#allocation2 + $0x8] sm:$0xff]
    %v63 = vld [vmem:[#allocation2 + $0x10] sm:$0xff]
    %v64 = vld [vmem:[#allocation2 + $0x18] sm:$0xff]
    %v65 = vld [vmem:[#allocation2 + $0x20] sm:$0xff]
    %v66 = vld [vmem:[#allocation2 + $0x28] sm:$0xff]
    %v67 = vld [vmem:[#allocation2 + $0x30] sm:$0xff]
    %v68 = vld [vmem:[#allocation2 + $0x38] sm:$0xff]
    %v69 = vld [vmem:[#allocation2 + $0x40] sm:$0xff]
    %v70 = vld [vmem:[#allocation2 + $0x48] sm:$0xff]
    %v71 = vld [vmem:[#allocation2 + $0x50] sm:$0xff]
    %v72 = vld [vmem:[#allocation2 + $0x58] sm:$0xff]
    %v73 = vld [vmem:[#allocation2 + $0x60] sm:$0xff]
    %v74 = vld [vmem:[#allocation2 + $0x68] sm:$0xff]
    %v75 = vld [vmem:[#allocation2 + $0x70] sm:$0xff]
    %v76 = vld [vmem:[#allocation2 + $0x78] sm:$0xff]
    %v77 = vld [vmem:[#allocation2 + $0x80] sm:$0xff]
    %v78 = vld [vmem:[#allocation2 + $0x88] sm:$0xff]
    %v79 = vld [vmem:[#allocation2 + $0x90] sm:$0xff]
    %v80 = vld [vmem:[#allocation2 + $0x98] sm:$0xff]
    %v81 = vld [vmem:[#allocation2 + $0xa0] sm:$0xff]
    %v82 = vld [vmem:[#allocation2 + $0xa8] sm:$0xff]
    %v83 = vld [vmem:[#allocation2 + $0xb0] sm:$0xff]
    %v84 = vld [vmem:[#allocation2 + $0xb8] sm:$0xff]
    %v85 = vld [vmem:[#allocation2 + $0xc0] sm:$0xff]
    %v86 = vld [vmem:[#allocation2 + $0xc8] sm:$0xff]
    %v87 = vld [vmem:[#allocation2 + $0xd0] sm:$0xff]
    %v88 = vld [vmem:[#allocation2 + $0xd8] sm:$0xff]
    %v89 = vld [vmem:[#allocation2 + $0xe0] sm:$0xff]
    %v90 = vld [vmem:[#allocation2 + $0xe8] sm:$0xff]
    %v91 = vld [vmem:[#allocation2 + $0xf0] sm:$0xff]
    %v92 = vld [vmem:[#allocation2 + $0xf8] sm:$0xff]
    %v93 = vld [vmem:[#allocation4] sm:$0xff]
    %v94 = vld [vmem:[#allocation4 + $0x8] sm:$0xff]
    %v95 = vld [vmem:[#allocation4 + $0x10] sm:$0xff]
    %v96 = vld [vmem:[#allocation4 + $0x18] sm:$0xff]
    %v97 = vld [vmem:[#allocation4 + $0x20] sm:$0xff]
    %v98 = vld [vmem:[#allocation4 + $0x28] sm:$0xff]
    %v99 = vld [vmem:[#allocation4 + $0x30] sm:$0xff]
    %v100 = vld [vmem:[#allocation4 + $0x38] sm:$0xff]
    %v101 = vld [vmem:[%s2] sm:$0x1]
    %v103 = vlaneseq
    %v104 = vshrl.u32 %v103, 7
    %v105 = vsub.s32 0, %v104
    %v106 = vrot.slane %v101, %v105
    %vm108 = vcmask 523264
    %v110 = vsel %vm108, %v61, 0
    %v113 = vsel %vm108, %v62, 0
    %v116 = vsel %vm108, %v63, 0
    %v119 = vsel %vm108, %v64, 0
    %v122 = vsel %vm108, %v65, 0
    %v125 = vsel %vm108, %v66, 0
    %v128 = vsel %vm108, %v67, 0
    %v131 = vsel %vm108, %v68, 0
    %v134 = vsel %vm108, %v69, 0
    %v137 = vsel %vm108, %v70, 0
    %v140 = vsel %vm108, %v71, 0
    %v143 = vsel %vm108, %v72, 0
    %v146 = vsel %vm108, %v73, 0
    %v149 = vsel %vm108, %v74, 0
    %v152 = vsel %vm108, %v75, 0
    %v155 = vsel %vm108, %v76, 0
    %v158 = vsel %vm108, %v77, 0
    %v161 = vsel %vm108, %v78, 0
    %v164 = vsel %vm108, %v79, 0
    %v167 = vsel %vm108, %v80, 0
    %v170 = vsel %vm108, %v81, 0
    %v173 = vsel %vm108, %v82, 0
    %v176 = vsel %vm108, %v83, 0
    %v179 = vsel %vm108, %v84, 0
    %v182 = vsel %vm108, %v85, 0
    %v185 = vsel %vm108, %v86, 0
    %v188 = vsel %vm108, %v87, 0
    %v191 = vsel %vm108, %v88, 0
    %v194 = vsel %vm108, %v89, 0
    %v197 = vsel %vm108, %v90, 0
    %v200 = vsel %vm108, %v91, 0
    %v203 = vsel %vm108, %v92, 0
    %205 = vmatprep.subr.mxu0 0.0
    %206 = vmatpush1.msra.mxu0 %v93
    %207 = vmatprep.subr.mxu0 0.0
    %208 = vmatpush1.msra.mxu0 %v94
    %209 = vmatprep.subr.mxu0 0.0
    %210 = vmatpush1.msra.mxu0 %v95
    %211 = vmatprep.subr.mxu0 0.0
    %212 = vmatpush1.msra.mxu0 %v96
    %213 = vmatprep.subr.mxu0 0.0
    %214 = vmatpush1.msra.mxu0 %v97
    %215 = vmatprep.subr.mxu0 0.0
    %216 = vmatpush1.msra.mxu0 %v98
    %217 = vmatprep.subr.mxu0 0.0
    %218 = vmatpush1.msra.mxu0 %v99
    %219 = vmatprep.subr.mxu0 0.0
    %220 = vmatpush1.msra.mxu0 %v100
    %221 = vmatprep.subr.mxu0 0.0
    %222 = vmatpush1.msra.mxu0 0.0
    %223 = vmatprep.subr.mxu0 0.0
    %224 = vmatpush1.msra.mxu0 0.0
    %225 = vmatprep.subr.mxu0 0.0
    %226 = vmatpush1.msra.mxu0 0.0
    %227 = vmatprep.subr.mxu0 0.0
    %228 = vmatpush1.msra.mxu0 0.0
    %229 = vmatprep.subr.mxu0 0.0
    %230 = vmatpush1.msra.mxu0 0.0
    %231 = vmatprep.subr.mxu0 0.0
    %232 = vmatpush1.msra.mxu0 0.0
    %233 = vmatprep.subr.mxu0 0.0
    %234 = vmatpush1.msra.mxu0 0.0
    %235 = vmatprep.subr.mxu0 0.0
    %236 = vmatpush1.msra.mxu0 0.0
    %237 = vmatprep.subr.mxu0 0.0
    %238 = vmatpush1.msra.mxu0 0.0
    %239 = vmatprep.subr.mxu0 0.0
    %240 = vmatpush1.msra.mxu0 0.0
    %241 = vmatprep.subr.mxu0 0.0
    %242 = vmatpush1.msra.mxu0 0.0
    %243 = vmatprep.subr.mxu0 0.0
    %244 = vmatpush1.msra.mxu0 0.0
    %245 = vmatprep.subr.mxu0 0.0
    %246 = vmatpush1.msra.mxu0 0.0
    %247 = vmatprep.subr.mxu0 0.0
    %248 = vmatpush1.msra.mxu0 0.0
    %249 = vmatprep.subr.mxu0 0.0
    %250 = vmatpush1.msra.mxu0 0.0
    %251 = vmatprep.subr.mxu0 0.0
    %252 = vmatpush1.msra.mxu0 0.0
    %253 = vmatprep.subr.mxu0 0.0
    %254 = vmatpush1.msra.mxu0 0.0
    %255 = vmatprep.subr.mxu0 0.0
    %256 = vmatpush1.msra.mxu0 0.0
    %257 = vmatprep.subr.mxu0 0.0
    %258 = vmatpush1.msra.mxu0 0.0
    %259 = vmatprep.subr.mxu0 0.0
    %260 = vmatpush1.msra.mxu0 0.0
    %261 = vmatprep.subr.mxu0 0.0
    %262 = vmatpush1.msra.mxu0 0.0
    %263 = vmatprep.subr.mxu0 0.0
    %264 = vmatpush1.msra.mxu0 0.0
    %265 = vmatprep.subr.mxu0 0.0
    %266 = vmatpush1.msra.mxu0 0.0
    %267 = vmatprep.subr.mxu0 0.0
    %268 = vmatpush1.msra.mxu0 0.0
    %269 = vmatprep.mubr.f32.mxu0 0.0
    %270 = vmatmul.mubr.f32.gmra.mrb[0].mxu0 %v110
    %v271 = vpop.f32.mrb[0].mxu0
    %v272 = vadd.f32 %v106, %v271
    %v273 = vpop.f32.mrb[0].mxu0
    %274 = vmatprep.mubr.f32.mxu0 0.0
    %275 = vmatmul.mubr.f32.gmra.mrb[0].mxu0 %v113
    %v276 = vpop.f32.mrb[0].mxu0
    %v277 = vadd.f32 %v106, %v276
    %v278 = vpop.f32.mrb[0].mxu0
    %279 = vmatprep.mubr.f32.mxu0 0.0
    %280 = vmatmul.mubr.f32.gmra.mrb[0].mxu0 %v116
    %v281 = vpop.f32.mrb[0].mxu0
    %v282 = vadd.f32 %v106, %v281
    %v283 = vpop.f32.mrb[0].mxu0
    %284 = vmatprep.mubr.f32.mxu0 0.0
    %285 = vmatmul.mubr.f32.gmra.mrb[0].mxu0 %v119
    %v286 = vpop.f32.mrb[0].mxu0
    %v287 = vadd.f32 %v106, %v286
    %v288 = vpop.f32.mrb[0].mxu0
    %289 = vmatprep.mubr.f32.mxu0 0.0
    %290 = vmatmul.mubr.f32.gmra.mrb[0].mxu0 %v122
    %v291 = vpop.f32.mrb[0].mxu0
    %v292 = vadd.f32 %v106, %v291
    %v293 = vpop.f32.mrb[0].mxu0
    %294 = vmatprep.mubr.f32.mxu0 0.0
    %295 = vmatmul.mubr.f32.gmra.mrb[0].mxu0 %v125
    %v296 = vpop.f32.mrb[0].mxu0
    %v297 = vadd.f32 %v106, %v296
    %v298 = vpop.f32.mrb[0].mxu0
    %299 = vmatprep.mubr.f32.mxu0 0.0
    %300 = vmatmul.mubr.f32.gmra.mrb[0].mxu0 %v128
    %v301 = vpop.f32.mrb[0].mxu0
    %v302 = vadd.f32 %v106, %v301
    %v303 = vpop.f32.mrb[0].mxu0
    %304 = vmatprep.mubr.f32.mxu0 0.0
    %305 = vmatmul.mubr.f32.gmra.mrb[0].mxu0 %v131
    %v306 = vpop.f32.mrb[0].mxu0
    %v307 = vadd.f32 %v106, %v306
    %v308 = vpop.f32.mrb[0].mxu0
    %309 = vmatprep.mubr.f32.mxu0 0.0
    %310 = vmatmul.mubr.f32.gmra.mrb[0].mxu0 %v134
    %v311 = vpop.f32.mrb[0].mxu0
    %v312 = vadd.f32 %v106, %v311
    %v313 = vpop.f32.mrb[0].mxu0
    %314 = vmatprep.mubr.f32.mxu0 0.0
    %315 = vmatmul.mubr.f32.gmra.mrb[0].mxu0 %v137
    %v316 = vpop.f32.mrb[0].mxu0
    %v317 = vadd.f32 %v106, %v316
    %v318 = vpop.f32.mrb[0].mxu0
    %319 = vmatprep.mubr.f32.mxu0 0.0
    %320 = vmatmul.mubr.f32.gmra.mrb[0].mxu0 %v140
    %v321 = vpop.f32.mrb[0].mxu0
    %v322 = vadd.f32 %v106, %v321
    %v323 = vpop.f32.mrb[0].mxu0
    %324 = vmatprep.mubr.f32.mxu0 0.0
    %325 = vmatmul.mubr.f32.gmra.mrb[0].mxu0 %v143
    %v326 = vpop.f32.mrb[0].mxu0
    %v327 = vadd.f32 %v106, %v326
    %v328 = vpop.f32.mrb[0].mxu0
    %329 = vmatprep.mubr.f32.mxu0 0.0
    %330 = vmatmul.mubr.f32.gmra.mrb[0].mxu0 %v146
    %v331 = vpop.f32.mrb[0].mxu0
    %v332 = vadd.f32 %v106, %v331
    %v333 = vpop.f32.mrb[0].mxu0
    %334 = vmatprep.mubr.f32.mxu0 0.0
    %335 = vmatmul.mubr.f32.gmra.mrb[0].mxu0 %v149
    %v336 = vpop.f32.mrb[0].mxu0
    %v337 = vadd.f32 %v106, %v336
    %v338 = vpop.f32.mrb[0].mxu0
    %339 = vmatprep.mubr.f32.mxu0 0.0
    %340 = vmatmul.mubr.f32.gmra.mrb[0].mxu0 %v152
    %v341 = vpop.f32.mrb[0].mxu0
    %v342 = vadd.f32 %v106, %v341
    %v343 = vpop.f32.mrb[0].mxu0
    %344 = vmatprep.mubr.f32.mxu0 0.0
    %345 = vmatmul.mubr.f32.gmra.mrb[0].mxu0 %v155
    %v346 = vpop.f32.mrb[0].mxu0
    %v347 = vadd.f32 %v106, %v346
    %v348 = vpop.f32.mrb[0].mxu0
    %349 = vmatprep.mubr.f32.mxu0 0.0
    %350 = vmatmul.mubr.f32.gmra.mrb[0].mxu0 %v158
    %v351 = vpop.f32.mrb[0].mxu0
    %v352 = vadd.f32 %v106, %v351
    %v353 = vpop.f32.mrb[0].mxu0
    %354 = vmatprep.mubr.f32.mxu0 0.0
    %355 = vmatmul.mubr.f32.gmra.mrb[0].mxu0 %v161
    %v356 = vpop.f32.mrb[0].mxu0
    %v357 = vadd.f32 %v106, %v356
    %v358 = vpop.f32.mrb[0].mxu0
    %359 = vmatprep.mubr.f32.mxu0 0.0
    %360 = vmatmul.mubr.f32.gmra.mrb[0].mxu0 %v164
    %v361 = vpop.f32.mrb[0].mxu0
    %v362 = vadd.f32 %v106, %v361
    %v363 = vpop.f32.mrb[0].mxu0
    %364 = vmatprep.mubr.f32.mxu0 0.0
    %365 = vmatmul.mubr.f32.gmra.mrb[0].mxu0 %v167
    %v366 = vpop.f32.mrb[0].mxu0
    %v367 = vadd.f32 %v106, %v366
    %v368 = vpop.f32.mrb[0].mxu0
    %369 = vmatprep.mubr.f32.mxu0 0.0
    %370 = vmatmul.mubr.f32.gmra.mrb[0].mxu0 %v170
    %v371 = vpop.f32.mrb[0].mxu0
    %v372 = vadd.f32 %v106, %v371
    %v373 = vpop.f32.mrb[0].mxu0
    %374 = vmatprep.mubr.f32.mxu0 0.0
    %375 = vmatmul.mubr.f32.gmra.mrb[0].mxu0 %v173
    %v376 = vpop.f32.mrb[0].mxu0
    %v377 = vadd.f32 %v106, %v376
    %v378 = vpop.f32.mrb[0].mxu0
    %379 = vmatprep.mubr.f32.mxu0 0.0
    %380 = vmatmul.mubr.f32.gmra.mrb[0].mxu0 %v176
    %v381 = vpop.f32.mrb[0].mxu0
    %v382 = vadd.f32 %v106, %v381
    %v383 = vpop.f32.mrb[0].mxu0
    %384 = vmatprep.mubr.f32.mxu0 0.0
    %385 = vmatmul.mubr.f32.gmra.mrb[0].mxu0 %v179
    %v386 = vpop.f32.mrb[0].mxu0
    %v387 = vadd.f32 %v106, %v386
    %v388 = vpop.f32.mrb[0].mxu0
    %389 = vmatprep.mubr.f32.mxu0 0.0
    %390 = vmatmul.mubr.f32.gmra.mrb[0].mxu0 %v182
    %v391 = vpop.f32.mrb[0].mxu0
    %v392 = vadd.f32 %v106, %v391
    %v393 = vpop.f32.mrb[0].mxu0
    %394 = vmatprep.mubr.f32.mxu0 0.0
    %395 = vmatmul.mubr.f32.gmra.mrb[0].mxu0 %v185
    %v396 = vpop.f32.mrb[0].mxu0
    %v397 = vadd.f32 %v106, %v396
    %v398 = vpop.f32.mrb[0].mxu0
    %399 = vmatprep.mubr.f32.mxu0 0.0
    %400 = vmatmul.mubr.f32.gmra.mrb[0].mxu0 %v188
    %v401 = vpop.f32.mrb[0].mxu0
    %v402 = vadd.f32 %v106, %v401
    %v403 = vpop.f32.mrb[0].mxu0
    %404 = vmatprep.mubr.f32.mxu0 0.0
    %405 = vmatmul.mubr.f32.gmra.mrb[0].mxu0 %v191
    %v406 = vpop.f32.mrb[0].mxu0
    %v407 = vadd.f32 %v106, %v406
    %v408 = vpop.f32.mrb[0].mxu0
    %409 = vmatprep.mubr.f32.mxu0 0.0
    %410 = vmatmul.mubr.f32.gmra.mrb[0].mxu0 %v194
    %v411 = vpop.f32.mrb[0].mxu0
    %v412 = vadd.f32 %v106, %v411
    %v413 = vpop.f32.mrb[0].mxu0
    %414 = vmatprep.mubr.f32.mxu0 0.0
    %415 = vmatmul.mubr.f32.gmra.mrb[0].mxu0 %v197
    %v416 = vpop.f32.mrb[0].mxu0
    %v417 = vadd.f32 %v106, %v416
    %v418 = vpop.f32.mrb[0].mxu0
    %419 = vmatprep.mubr.f32.mxu0 0.0
    %420 = vmatmul.mubr.f32.gmra.mrb[0].mxu0 %v200
    %v421 = vpop.f32.mrb[0].mxu0
    %v422 = vadd.f32 %v106, %v421
    %v423 = vpop.f32.mrb[0].mxu0
    %424 = vmatprep.mubr.f32.mxu0 0.0
    %425 = vmatmul.mubr.f32.gmra.mrb[0].mxu0 %v203
    %v426 = vpop.f32.mrb[0].mxu0
    %v427 = vadd.f32 %v106, %v426
    %v428 = vpop.f32.mrb[0].mxu0
    %429 = vdwg.mxu0
    %v430 = vmax.f32 %v272, 0.0
    %v431 = vmax.f32 %v277, 0.0
    %v432 = vmax.f32 %v282, 0.0
    %v433 = vmax.f32 %v287, 0.0
    %v434 = vmax.f32 %v292, 0.0
    %v435 = vmax.f32 %v297, 0.0
    %v436 = vmax.f32 %v302, 0.0
    %v437 = vmax.f32 %v307, 0.0
    %v438 = vmax.f32 %v312, 0.0
    %v439 = vmax.f32 %v317, 0.0
    %v440 = vmax.f32 %v322, 0.0
    %v441 = vmax.f32 %v327, 0.0
    %v442 = vmax.f32 %v332, 0.0
    %v443 = vmax.f32 %v337, 0.0
    %v444 = vmax.f32 %v342, 0.0
    %v445 = vmax.f32 %v347, 0.0
    %v446 = vmax.f32 %v352, 0.0
    %v447 = vmax.f32 %v357, 0.0
    %v448 = vmax.f32 %v362, 0.0
    %v449 = vmax.f32 %v367, 0.0
    %v450 = vmax.f32 %v372, 0.0
    %v451 = vmax.f32 %v377, 0.0
    %v452 = vmax.f32 %v382, 0.0
    %v453 = vmax.f32 %v387, 0.0
    %v454 = vmax.f32 %v392, 0.0
    %v455 = vmax.f32 %v397, 0.0
    %v456 = vmax.f32 %v402, 0.0
    %v457 = vmax.f32 %v407, 0.0
    %v458 = vmax.f32 %v412, 0.0
    %v459 = vmax.f32 %v417, 0.0
    %v460 = vmax.f32 %v422, 0.0
    %v461 = vmax.f32 %v427, 0.0
    %462 = vrot.lane.b32.xlu0 %v61, 64
    %v463 = vpop.permute.xlu0 %462
    %464 = vrot.lane.b32.xlu0 %v62, 64
    %v465 = vpop.permute.xlu0 %464
    %466 = vrot.lane.b32.xlu0 %v63, 64
    %v467 = vpop.permute.xlu0 %466
    %468 = vrot.lane.b32.xlu0 %v64, 64
    %v469 = vpop.permute.xlu0 %468
    %470 = vrot.lane.b32.xlu0 %v65, 64
    %v471 = vpop.permute.xlu0 %470
    %472 = vrot.lane.b32.xlu0 %v66, 64
    %v473 = vpop.permute.xlu0 %472
    %474 = vrot.lane.b32.xlu0 %v67, 64
    %v475 = vpop.permute.xlu0 %474
    %476 = vrot.lane.b32.xlu0 %v68, 64
    %v477 = vpop.permute.xlu0 %476
    %478 = vrot.lane.b32.xlu0 %v69, 64
    %v479 = vpop.permute.xlu0 %478
    %480 = vrot.lane.b32.xlu0 %v70, 64
    %v481 = vpop.permute.xlu0 %480
    %482 = vrot.lane.b32.xlu0 %v71, 64
    %v483 = vpop.permute.xlu0 %482
    %484 = vrot.lane.b32.xlu0 %v72, 64
    %v485 = vpop.permute.xlu0 %484
    %486 = vrot.lane.b32.xlu0 %v73, 64
    %v487 = vpop.permute.xlu0 %486
    %488 = vrot.lane.b32.xlu0 %v74, 64
    %v489 = vpop.permute.xlu0 %488
    %490 = vrot.lane.b32.xlu0 %v75, 64
    %v491 = vpop.permute.xlu0 %490
    %492 = vrot.lane.b32.xlu0 %v76, 64
    %v493 = vpop.permute.xlu0 %492
    %494 = vrot.lane.b32.xlu0 %v77, 64
    %v495 = vpop.permute.xlu0 %494
    %496 = vrot.lane.b32.xlu0 %v78, 64
    %v497 = vpop.permute.xlu0 %496
    %498 = vrot.lane.b32.xlu0 %v79, 64
    %v499 = vpop.permute.xlu0 %498
    %500 = vrot.lane.b32.xlu0 %v80, 64
    %v501 = vpop.permute.xlu0 %500
    %502 = vrot.lane.b32.xlu0 %v81, 64
    %v503 = vpop.permute.xlu0 %502
    %504 = vrot.lane.b32.xlu0 %v82, 64
    %v505 = vpop.permute.xlu0 %504
    %506 = vrot.lane.b32.xlu0 %v83, 64
    %v507 = vpop.permute.xlu0 %506
    %508 = vrot.lane.b32.xlu0 %v84, 64
    %v509 = vpop.permute.xlu0 %508
    %510 = vrot.lane.b32.xlu0 %v85, 64
    %v511 = vpop.permute.xlu0 %510
    %512 = vrot.lane.b32.xlu0 %v86, 64
    %v513 = vpop.permute.xlu0 %512
    %514 = vrot.lane.b32.xlu0 %v87, 64
    %v515 = vpop.permute.xlu0 %514
    %516 = vrot.lane.b32.xlu0 %v88, 64
    %v517 = vpop.permute.xlu0 %516
    %518 = vrot.lane.b32.xlu0 %v89, 64
    %v519 = vpop.permute.xlu0 %518
    %520 = vrot.lane.b32.xlu0 %v90, 64
    %v521 = vpop.permute.xlu0 %520
    %522 = vrot.lane.b32.xlu0 %v91, 64
    %v523 = vpop.permute.xlu0 %522
    %524 = vrot.lane.b32.xlu0 %v92, 64
    %v525 = vpop.permute.xlu0 %524
    %v526 = vsel %vm108, %v463, 0
    %v528 = vsel %vm108, %v465, 0
    %v530 = vsel %vm108, %v467, 0
    %v532 = vsel %vm108, %v469, 0
    %v534 = vsel %vm108, %v471, 0
    %v536 = vsel %vm108, %v473, 0
    %v538 = vsel %vm108, %v475, 0
    %v540 = vsel %vm108, %v477, 0
    %v542 = vsel %vm108, %v479, 0
    %v544 = vsel %vm108, %v481, 0
    %v546 = vsel %vm108, %v483, 0
    %v548 = vsel %vm108, %v485, 0
    %v550 = vsel %vm108, %v487, 0
    %v552 = vsel %vm108, %v489, 0
    %v554 = vsel %vm108, %v491, 0
    %v556 = vsel %vm108, %v493, 0
    %v558 = vsel %vm108, %v495, 0
    %v560 = vsel %vm108, %v497, 0
    %v562 = vsel %vm108, %v499, 0
    %v564 = vsel %vm108, %v501, 0
    %v566 = vsel %vm108, %v503, 0
    %v568 = vsel %vm108, %v505, 0
    %v570 = vsel %vm108, %v507, 0
    %v572 = vsel %vm108, %v509, 0
    %v574 = vsel %vm108, %v511, 0
    %v576 = vsel %vm108, %v513, 0
    %v578 = vsel %vm108, %v515, 0
    %v580 = vsel %vm108, %v517, 0
    %v582 = vsel %vm108, %v519, 0
    %v584 = vsel %vm108, %v521, 0
    %v586 = vsel %vm108, %v523, 0
    %v588 = vsel %vm108, %v525, 0
    %590 = vmatprep.subr.mxu0 0.0
    %591 = vmatpush1.msra.mxu0 %v93
    %592 = vmatprep.subr.mxu0 0.0
    %593 = vmatpush1.msra.mxu0 %v94
    %594 = vmatprep.subr.mxu0 0.0
    %595 = vmatpush1.msra.mxu0 %v95
    %596 = vmatprep.subr.mxu0 0.0
    %597 = vmatpush1.msra.mxu0 %v96
    %598 = vmatprep.subr.mxu0 0.0
    %599 = vmatpush1.msra.mxu0 %v97
    %600 = vmatprep.subr.mxu0 0.0
    %601 = vmatpush1.msra.mxu0 %v98
    %602 = vmatprep.subr.mxu0 0.0
    %603 = vmatpush1.msra.mxu0 %v99
    %604 = vmatprep.subr.mxu0 0.0
    %605 = vmatpush1.msra.mxu0 %v100
    %606 = vmatprep.subr.mxu0 0.0
    %607 = vmatpush1.msra.mxu0 0.0
    %608 = vmatprep.subr.mxu0 0.0
    %609 = vmatpush1.msra.mxu0 0.0
    %610 = vmatprep.subr.mxu0 0.0
    %611 = vmatpush1.msra.mxu0 0.0
    %612 = vmatprep.subr.mxu0 0.0
    %613 = vmatpush1.msra.mxu0 0.0
    %614 = vmatprep.subr.mxu0 0.0
    %615 = vmatpush1.msra.mxu0 0.0
    %616 = vmatprep.subr.mxu0 0.0
    %617 = vmatpush1.msra.mxu0 0.0
    %618 = vmatprep.subr.mxu0 0.0
    %619 = vmatpush1.msra.mxu0 0.0
    %620 = vmatprep.subr.mxu0 0.0
    %621 = vmatpush1.msra.mxu0 0.0
    %622 = vmatprep.subr.mxu0 0.0
    %623 = vmatpush1.msra.mxu0 0.0
    %624 = vmatprep.subr.mxu0 0.0
    %625 = vmatpush1.msra.mxu0 0.0
    %626 = vmatprep.subr.mxu0 0.0
    %627 = vmatpush1.msra.mxu0 0.0
    %628 = vmatprep.subr.mxu0 0.0
    %629 = vmatpush1.msra.mxu0 0.0
    %630 = vmatprep.subr.mxu0 0.0
    %631 = vmatpush1.msra.mxu0 0.0
    %632 = vmatprep.subr.mxu0 0.0
    %633 = vmatpush1.msra.mxu0 0.0
    %634 = vmatprep.subr.mxu0 0.0
    %635 = vmatpush1.msra.mxu0 0.0
    %636 = vmatprep.subr.mxu0 0.0
    %637 = vmatpush1.msra.mxu0 0.0
    %638 = vmatprep.subr.mxu0 0.0
    %639 = vmatpush1.msra.mxu0 0.0
    %640 = vmatprep.subr.mxu0 0.0
    %641 = vmatpush1.msra.mxu0 0.0
    %642 = vmatprep.subr.mxu0 0.0
    %643 = vmatpush1.msra.mxu0 0.0
    %644 = vmatprep.subr.mxu0 0.0
    %645 = vmatpush1.msra.mxu0 0.0
    %646 = vmatprep.subr.mxu0 0.0
    %647 = vmatpush1.msra.mxu0 0.0
    %648 = vmatprep.subr.mxu0 0.0
    %649 = vmatpush1.msra.mxu0 0.0
    %650 = vmatprep.subr.mxu0 0.0
    %651 = vmatpush1.msra.mxu0 0.0
    %652 = vmatprep.subr.mxu0 0.0
    %653 = vmatpush1.msra.mxu0 0.0
    %654 = vmatprep.mubr.f32.mxu0 0.0
    %655 = vmatmul.mubr.f32.gmra.mrb[0].mxu0 %v526
    %v656 = vpop.f32.mrb[0].mxu0
    %v657 = vadd.f32 %v106, %v656
    %v658 = vpop.f32.mrb[0].mxu0
    %659 = vmatprep.mubr.f32.mxu0 0.0
    %660 = vmatmul.mubr.f32.gmra.mrb[0].mxu0 %v528
    %v661 = vpop.f32.mrb[0].mxu0
    %v662 = vadd.f32 %v106, %v661
    %v663 = vpop.f32.mrb[0].mxu0
    %664 = vmatprep.mubr.f32.mxu0 0.0
    %665 = vmatmul.mubr.f32.gmra.mrb[0].mxu0 %v530
    %v666 = vpop.f32.mrb[0].mxu0
    %v667 = vadd.f32 %v106, %v666
    %v668 = vpop.f32.mrb[0].mxu0
    %669 = vmatprep.mubr.f32.mxu0 0.0
    %670 = vmatmul.mubr.f32.gmra.mrb[0].mxu0 %v532
    %v671 = vpop.f32.mrb[0].mxu0
    %v672 = vadd.f32 %v106, %v671
    %v673 = vpop.f32.mrb[0].mxu0
    %674 = vmatprep.mubr.f32.mxu0 0.0
    %675 = vmatmul.mubr.f32.gmra.mrb[0].mxu0 %v534
    %v676 = vpop.f32.mrb[0].mxu0
    %v677 = vadd.f32 %v106, %v676
    %v678 = vpop.f32.mrb[0].mxu0
    %679 = vmatprep.mubr.f32.mxu0 0.0
    %680 = vmatmul.mubr.f32.gmra.mrb[0].mxu0 %v536
    %v681 = vpop.f32.mrb[0].mxu0
    %v682 = vadd.f32 %v106, %v681
    %v683 = vpop.f32.mrb[0].mxu0
    %684 = vmatprep.mubr.f32.mxu0 0.0
    %685 = vmatmul.mubr.f32.gmra.mrb[0].mxu0 %v538
    %v686 = vpop.f32.mrb[0].mxu0
    %v687 = vadd.f32 %v106, %v686
    %v688 = vpop.f32.mrb[0].mxu0
    %689 = vmatprep.mubr.f32.mxu0 0.0
    %690 = vmatmul.mubr.f32.gmra.mrb[0].mxu0 %v540
    %v691 = vpop.f32.mrb[0].mxu0
    %v692 = vadd.f32 %v106, %v691
    %v693 = vpop.f32.mrb[0].mxu0
    %694 = vmatprep.mubr.f32.mxu0 0.0
    %695 = vmatmul.mubr.f32.gmra.mrb[0].mxu0 %v542
    %v696 = vpop.f32.mrb[0].mxu0
    %v697 = vadd.f32 %v106, %v696
    %v698 = vpop.f32.mrb[0].mxu0
    %699 = vmatprep.mubr.f32.mxu0 0.0
    %700 = vmatmul.mubr.f32.gmra.mrb[0].mxu0 %v544
    %v701 = vpop.f32.mrb[0].mxu0
    %v702 = vadd.f32 %v106, %v701
    %v703 = vpop.f32.mrb[0].mxu0
    %704 = vmatprep.mubr.f32.mxu0 0.0
    %705 = vmatmul.mubr.f32.gmra.mrb[0].mxu0 %v546
    %v706 = vpop.f32.mrb[0].mxu0
    %v707 = vadd.f32 %v106, %v706
    %v708 = vpop.f32.mrb[0].mxu0
    %709 = vmatprep.mubr.f32.mxu0 0.0
    %710 = vmatmul.mubr.f32.gmra.mrb[0].mxu0 %v548
    %v711 = vpop.f32.mrb[0].mxu0
    %v712 = vadd.f32 %v106, %v711
    %v713 = vpop.f32.mrb[0].mxu0
    %714 = vmatprep.mubr.f32.mxu0 0.0
    %715 = vmatmul.mubr.f32.gmra.mrb[0].mxu0 %v550
    %v716 = vpop.f32.mrb[0].mxu0
    %v717 = vadd.f32 %v106, %v716
    %v718 = vpop.f32.mrb[0].mxu0
    %719 = vmatprep.mubr.f32.mxu0 0.0
    %720 = vmatmul.mubr.f32.gmra.mrb[0].mxu0 %v552
    %v721 = vpop.f32.mrb[0].mxu0
    %v722 = vadd.f32 %v106, %v721
    %v723 = vpop.f32.mrb[0].mxu0
    %724 = vmatprep.mubr.f32.mxu0 0.0
    %725 = vmatmul.mubr.f32.gmra.mrb[0].mxu0 %v554
    %v726 = vpop.f32.mrb[0].mxu0
    %v727 = vadd.f32 %v106, %v726
    %v728 = vpop.f32.mrb[0].mxu0
    %729 = vmatprep.mubr.f32.mxu0 0.0
    %730 = vmatmul.mubr.f32.gmra.mrb[0].mxu0 %v556
    %v731 = vpop.f32.mrb[0].mxu0
    %v732 = vadd.f32 %v106, %v731
    %v733 = vpop.f32.mrb[0].mxu0
    %734 = vmatprep.mubr.f32.mxu0 0.0
    %735 = vmatmul.mubr.f32.gmra.mrb[0].mxu0 %v558
    %v736 = vpop.f32.mrb[0].mxu0
    %v737 = vadd.f32 %v106, %v736
    %v738 = vpop.f32.mrb[0].mxu0
    %739 = vmatprep.mubr.f32.mxu0 0.0
    %740 = vmatmul.mubr.f32.gmra.mrb[0].mxu0 %v560
    %v741 = vpop.f32.mrb[0].mxu0
    %v742 = vadd.f32 %v106, %v741
    %v743 = vpop.f32.mrb[0].mxu0
    %744 = vmatprep.mubr.f32.mxu0 0.0
    %745 = vmatmul.mubr.f32.gmra.mrb[0].mxu0 %v562
    %v746 = vpop.f32.mrb[0].mxu0
    %v747 = vadd.f32 %v106, %v746
    %v748 = vpop.f32.mrb[0].mxu0
    %749 = vmatprep.mubr.f32.mxu0 0.0
    %750 = vmatmul.mubr.f32.gmra.mrb[0].mxu0 %v564
    %v751 = vpop.f32.mrb[0].mxu0
    %v752 = vadd.f32 %v106, %v751
    %v753 = vpop.f32.mrb[0].mxu0
    %754 = vmatprep.mubr.f32.mxu0 0.0
    %755 = vmatmul.mubr.f32.gmra.mrb[0].mxu0 %v566
    %v756 = vpop.f32.mrb[0].mxu0
    %v757 = vadd.f32 %v106, %v756
    %v758 = vpop.f32.mrb[0].mxu0
    %759 = vmatprep.mubr.f32.mxu0 0.0
    %760 = vmatmul.mubr.f32.gmra.mrb[0].mxu0 %v568
    %v761 = vpop.f32.mrb[0].mxu0
    %v762 = vadd.f32 %v106, %v761
    %v763 = vpop.f32.mrb[0].mxu0
    %764 = vmatprep.mubr.f32.mxu0 0.0
    %765 = vmatmul.mubr.f32.gmra.mrb[0].mxu0 %v570
    %v766 = vpop.f32.mrb[0].mxu0
    %v767 = vadd.f32 %v106, %v766
    %v768 = vpop.f32.mrb[0].mxu0
    %769 = vmatprep.mubr.f32.mxu0 0.0
    %770 = vmatmul.mubr.f32.gmra.mrb[0].mxu0 %v572
    %v771 = vpop.f32.mrb[0].mxu0
    %v772 = vadd.f32 %v106, %v771
    %v773 = vpop.f32.mrb[0].mxu0
    %774 = vmatprep.mubr.f32.mxu0 0.0
    %775 = vmatmul.mubr.f32.gmra.mrb[0].mxu0 %v574
    %v776 = vpop.f32.mrb[0].mxu0
    %v777 = vadd.f32 %v106, %v776
    %v778 = vpop.f32.mrb[0].mxu0
    %779 = vmatprep.mubr.f32.mxu0 0.0
    %780 = vmatmul.mubr.f32.gmra.mrb[0].mxu0 %v576
    %v781 = vpop.f32.mrb[0].mxu0
    %v782 = vadd.f32 %v106, %v781
    %v783 = vpop.f32.mrb[0].mxu0
    %784 = vmatprep.mubr.f32.mxu0 0.0
    %785 = vmatmul.mubr.f32.gmra.mrb[0].mxu0 %v578
    %v786 = vpop.f32.mrb[0].mxu0
    %v787 = vadd.f32 %v106, %v786
    %v788 = vpop.f32.mrb[0].mxu0
    %789 = vmatprep.mubr.f32.mxu0 0.0
    %790 = vmatmul.mubr.f32.gmra.mrb[0].mxu0 %v580
    %v791 = vpop.f32.mrb[0].mxu0
    %v792 = vadd.f32 %v106, %v791
    %v793 = vpop.f32.mrb[0].mxu0
    %794 = vmatprep.mubr.f32.mxu0 0.0
    %795 = vmatmul.mubr.f32.gmra.mrb[0].mxu0 %v582
    %v796 = vpop.f32.mrb[0].mxu0
    %v797 = vadd.f32 %v106, %v796
    %v798 = vpop.f32.mrb[0].mxu0
    %799 = vmatprep.mubr.f32.mxu0 0.0
    %800 = vmatmul.mubr.f32.gmra.mrb[0].mxu0 %v584
    %v801 = vpop.f32.mrb[0].mxu0
    %v802 = vadd.f32 %v106, %v801
    %v803 = vpop.f32.mrb[0].mxu0
    %804 = vmatprep.mubr.f32.mxu0 0.0
    %805 = vmatmul.mubr.f32.gmra.mrb[0].mxu0 %v586
    %v806 = vpop.f32.mrb[0].mxu0
    %v807 = vadd.f32 %v106, %v806
    %v808 = vpop.f32.mrb[0].mxu0
    %809 = vmatprep.mubr.f32.mxu0 0.0
    %810 = vmatmul.mubr.f32.gmra.mrb[0].mxu0 %v588
    %v811 = vpop.f32.mrb[0].mxu0
    %v812 = vadd.f32 %v106, %v811
    %v813 = vpop.f32.mrb[0].mxu0
    %814 = vdwg.mxu0
    %v815 = vmax.f32 %v657, 0.0
    %v816 = vmax.f32 %v662, 0.0
    %v817 = vmax.f32 %v667, 0.0
    %v818 = vmax.f32 %v672, 0.0
    %v819 = vmax.f32 %v677, 0.0
    %v820 = vmax.f32 %v682, 0.0
    %v821 = vmax.f32 %v687, 0.0
    %v822 = vmax.f32 %v692, 0.0
    %v823 = vmax.f32 %v697, 0.0
    %v824 = vmax.f32 %v702, 0.0
    %v825 = vmax.f32 %v707, 0.0
    %v826 = vmax.f32 %v712, 0.0
    %v827 = vmax.f32 %v717, 0.0
    %v828 = vmax.f32 %v722, 0.0
    %v829 = vmax.f32 %v727, 0.0
    %v830 = vmax.f32 %v732, 0.0
    %v831 = vmax.f32 %v737, 0.0
    %v832 = vmax.f32 %v742, 0.0
    %v833 = vmax.f32 %v747, 0.0
    %v834 = vmax.f32 %v752, 0.0
    %v835 = vmax.f32 %v757, 0.0
    %v836 = vmax.f32 %v762, 0.0
    %v837 = vmax.f32 %v767, 0.0
    %v838 = vmax.f32 %v772, 0.0
    %v839 = vmax.f32 %v777, 0.0
    %v840 = vmax.f32 %v782, 0.0
    %v841 = vmax.f32 %v787, 0.0
    %v842 = vmax.f32 %v792, 0.0
    %v843 = vmax.f32 %v797, 0.0
    %v844 = vmax.f32 %v802, 0.0
    %v845 = vmax.f32 %v807, 0.0
    %v846 = vmax.f32 %v812, 0.0
    %v847 = vld [vmem:[#allocation6] sm:$0xff]
    %v848 = vld [vmem:[#allocation6 + $0x8] sm:$0xff]
    %v849 = vld [vmem:[#allocation6 + $0x10] sm:$0xff]
    %v850 = vld [vmem:[#allocation6 + $0x18] sm:$0xff]
    %v851 = vld [vmem:[#allocation6 + $0x20] sm:$0xff]
    %v852 = vld [vmem:[#allocation6 + $0x28] sm:$0xff]
    %v853 = vld [vmem:[#allocation6 + $0x30] sm:$0xff]
    %v854 = vld [vmem:[#allocation6 + $0x38] sm:$0xff]
    %v855 = vld [vmem:[#allocation6 + $0x40] sm:$0xff]
    %v856 = vld [vmem:[#allocation6 + $0x48] sm:$0xff]
    %v857 = vld [vmem:[#allocation6 + $0x50] sm:$0xff]
    %v858 = vld [vmem:[#allocation6 + $0x58] sm:$0xff]
    %v859 = vld [vmem:[#allocation6 + $0x60] sm:$0xff]
    %v860 = vld [vmem:[#allocation6 + $0x68] sm:$0xff]
    %v861 = vld [vmem:[#allocation6 + $0x70] sm:$0xff]
    %v862 = vld [vmem:[#allocation6 + $0x78] sm:$0xff]
    %v863 = vld [vmem:[#allocation6 + $0x80] sm:$0xff]
    %v864 = vld [vmem:[#allocation6 + $0x88] sm:$0xff]
    %v865 = vld [vmem:[#allocation6 + $0x90] sm:$0xff]
    %v866 = vld [vmem:[#allocation6 + $0x98] sm:$0xff]
    %v867 = vld [vmem:[#allocation6 + $0xa0] sm:$0xff]
    %v868 = vld [vmem:[#allocation6 + $0xa8] sm:$0xff]
    %v869 = vld [vmem:[#allocation6 + $0xb0] sm:$0xff]
    %v870 = vld [vmem:[#allocation6 + $0xb8] sm:$0xff]
    %v871 = vld [vmem:[#allocation6 + $0xc0] sm:$0xff]
    %v872 = vld [vmem:[#allocation6 + $0xc8] sm:$0xff]
    %v873 = vld [vmem:[#allocation6 + $0xd0] sm:$0xff]
    %v874 = vld [vmem:[#allocation6 + $0xd8] sm:$0xff]
    %v875 = vld [vmem:[#allocation6 + $0xe0] sm:$0xff]
    %v876 = vld [vmem:[#allocation6 + $0xe8] sm:$0xff]
    %v877 = vld [vmem:[#allocation6 + $0xf0] sm:$0xff]
    %v878 = vld [vmem:[#allocation6 + $0xf8] sm:$0xff]
    %v879 = vld [vmem:[%s4] sm:$0x1]
    %v881 = vlaneseq
    %v882 = vshrl.u32 %v881, 7
    %v883 = vsub.s32 0, %v882
    %v884 = vrot.slane %v879, %v883
    %886 = vmatprep.subr.mxu0 0.0
    %887 = vmatpush1.msra.mxu0 %v847
    %888 = vmatprep.subr.mxu0 0.0
    %889 = vmatpush1.msra.mxu0 %v848
    %890 = vmatprep.subr.mxu0 0.0
    %891 = vmatpush1.msra.mxu0 %v849
    %892 = vmatprep.subr.mxu0 0.0
    %893 = vmatpush1.msra.mxu0 %v850
    %894 = vmatprep.subr.mxu0 0.0
    %895 = vmatpush1.msra.mxu0 %v851
    %896 = vmatprep.subr.mxu0 0.0
    %897 = vmatpush1.msra.mxu0 %v852
    %898 = vmatprep.subr.mxu0 0.0
    %899 = vmatpush1.msra.mxu0 %v853
    %900 = vmatprep.subr.mxu0 0.0
    %901 = vmatpush1.msra.mxu0 %v854
    %902 = vmatprep.subr.mxu0 0.0
    %903 = vmatpush1.msra.mxu0 %v855
    %904 = vmatprep.subr.mxu0 0.0
    %905 = vmatpush1.msra.mxu0 %v856
    %906 = vmatprep.subr.mxu0 0.0
    %907 = vmatpush1.msra.mxu0 %v857
    %908 = vmatprep.subr.mxu0 0.0
    %909 = vmatpush1.msra.mxu0 %v858
    %910 = vmatprep.subr.mxu0 0.0
    %911 = vmatpush1.msra.mxu0 %v859
    %912 = vmatprep.subr.mxu0 0.0
    %913 = vmatpush1.msra.mxu0 %v860
    %914 = vmatprep.subr.mxu0 0.0
    %915 = vmatpush1.msra.mxu0 %v861
    %916 = vmatprep.subr.mxu0 0.0
    %917 = vmatpush1.msra.mxu0 %v862
    %918 = vmatprep.subr.mxu0 0.0
    %919 = vmatpush1.msra.mxu0 %v863
    %920 = vmatprep.subr.mxu0 0.0
    %921 = vmatpush1.msra.mxu0 %v864
    %922 = vmatprep.subr.mxu0 0.0
    %923 = vmatpush1.msra.mxu0 %v865
    %924 = vmatprep.subr.mxu0 0.0
    %925 = vmatpush1.msra.mxu0 %v866
    %926 = vmatprep.subr.mxu0 0.0
    %927 = vmatpush1.msra.mxu0 %v867
    %928 = vmatprep.subr.mxu0 0.0
    %929 = vmatpush1.msra.mxu0 %v868
    %930 = vmatprep.subr.mxu0 0.0
    %931 = vmatpush1.msra.mxu0 %v869
    %932 = vmatprep.subr.mxu0 0.0
    %933 = vmatpush1.msra.mxu0 %v870
    %934 = vmatprep.subr.mxu0 0.0
    %935 = vmatpush1.msra.mxu0 %v871
    %936 = vmatprep.subr.mxu0 0.0
    %937 = vmatpush1.msra.mxu0 %v872
    %938 = vmatprep.subr.mxu0 0.0
    %939 = vmatpush1.msra.mxu0 %v873
    %940 = vmatprep.subr.mxu0 0.0
    %941 = vmatpush1.msra.mxu0 %v874
    %942 = vmatprep.subr.mxu0 0.0
    %943 = vmatpush1.msra.mxu0 %v875
    %944 = vmatprep.subr.mxu0 0.0
    %945 = vmatpush1.msra.mxu0 %v876
    %946 = vmatprep.subr.mxu0 0.0
    %947 = vmatpush1.msra.mxu0 %v877
    %948 = vmatprep.subr.mxu0 0.0
    %949 = vmatpush1.msra.mxu0 %v878
    %950 = vmatprep.mubr.f32.mxu0 %v815
    %951 = vmatmul.mubr.f32.gmra.mrb[0].mxu0 %v430
    %v952 = vpop.f32.mrb[0].mxu0
    %v953 = vadd.f32 %v884, %v952
    %v954 = vpop.f32.mrb[0].mxu0
    %955 = vmatprep.mubr.f32.mxu0 %v816
    %956 = vmatmul.mubr.f32.gmra.mrb[0].mxu0 %v431
    %v957 = vpop.f32.mrb[0].mxu0
    %v958 = vadd.f32 %v884, %v957
    %v959 = vpop.f32.mrb[0].mxu0
    %960 = vmatprep.mubr.f32.mxu0 %v817
    %961 = vmatmul.mubr.f32.gmra.mrb[0].mxu0 %v432
    %v962 = vpop.f32.mrb[0].mxu0
    %v963 = vadd.f32 %v884, %v962
    %v964 = vpop.f32.mrb[0].mxu0
    %965 = vmatprep.mubr.f32.mxu0 %v818
    %966 = vmatmul.mubr.f32.gmra.mrb[0].mxu0 %v433
    %v967 = vpop.f32.mrb[0].mxu0
    %v968 = vadd.f32 %v884, %v967
    %v969 = vpop.f32.mrb[0].mxu0
    %970 = vmatprep.mubr.f32.mxu0 %v819
    %971 = vmatmul.mubr.f32.gmra.mrb[0].mxu0 %v434
    %v972 = vpop.f32.mrb[0].mxu0
    %v973 = vadd.f32 %v884, %v972
    %v974 = vpop.f32.mrb[0].mxu0
    %975 = vmatprep.mubr.f32.mxu0 %v820
    %976 = vmatmul.mubr.f32.gmra.mrb[0].mxu0 %v435
    %v977 = vpop.f32.mrb[0].mxu0
    %v978 = vadd.f32 %v884, %v977
    %v979 = vpop.f32.mrb[0].mxu0
    %980 = vmatprep.mubr.f32.mxu0 %v821
    %981 = vmatmul.mubr.f32.gmra.mrb[0].mxu0 %v436
    %v982 = vpop.f32.mrb[0].mxu0
    %v983 = vadd.f32 %v884, %v982
    %v984 = vpop.f32.mrb[0].mxu0
    %985 = vmatprep.mubr.f32.mxu0 %v822
    %986 = vmatmul.mubr.f32.gmra.mrb[0].mxu0 %v437
    %v987 = vpop.f32.mrb[0].mxu0
    %v988 = vadd.f32 %v884, %v987
    %v989 = vpop.f32.mrb[0].mxu0
    %990 = vmatprep.mubr.f32.mxu0 %v823
    %991 = vmatmul.mubr.f32.gmra.mrb[0].mxu0 %v438
    %v992 = vpop.f32.mrb[0].mxu0
    %v993 = vadd.f32 %v884, %v992
    %v994 = vpop.f32.mrb[0].mxu0
    %995 = vmatprep.mubr.f32.mxu0 %v824
    %996 = vmatmul.mubr.f32.gmra.mrb[0].mxu0 %v439
    %v997 = vpop.f32.mrb[0].mxu0
    %v998 = vadd.f32 %v884, %v997
    %v999 = vpop.f32.mrb[0].mxu0
    %1000 = vmatprep.mubr.f32.mxu0 %v825
    %1001 = vmatmul.mubr.f32.gmra.mrb[0].mxu0 %v440
    %v1002 = vpop.f32.mrb[0].mxu0
    %v1003 = vadd.f32 %v884, %v1002
    %v1004 = vpop.f32.mrb[0].mxu0
    %1005 = vmatprep.mubr.f32.mxu0 %v826
    %1006 = vmatmul.mubr.f32.gmra.mrb[0].mxu0 %v441
    %v1007 = vpop.f32.mrb[0].mxu0
    %v1008 = vadd.f32 %v884, %v1007
    %v1009 = vpop.f32.mrb[0].mxu0
    %1010 = vmatprep.mubr.f32.mxu0 %v827
    %1011 = vmatmul.mubr.f32.gmra.mrb[0].mxu0 %v442
    %v1012 = vpop.f32.mrb[0].mxu0
    %v1013 = vadd.f32 %v884, %v1012
    %v1014 = vpop.f32.mrb[0].mxu0
    %1015 = vmatprep.mubr.f32.mxu0 %v828
    %1016 = vmatmul.mubr.f32.gmra.mrb[0].mxu0 %v443
    %v1017 = vpop.f32.mrb[0].mxu0
    %v1018 = vadd.f32 %v884, %v1017
    %v1019 = vpop.f32.mrb[0].mxu0
    %1020 = vmatprep.mubr.f32.mxu0 %v829
    %1021 = vmatmul.mubr.f32.gmra.mrb[0].mxu0 %v444
    %v1022 = vpop.f32.mrb[0].mxu0
    %v1023 = vadd.f32 %v884, %v1022
    %v1024 = vpop.f32.mrb[0].mxu0
    %1025 = vmatprep.mubr.f32.mxu0 %v830
    %1026 = vmatmul.mubr.f32.gmra.mrb[0].mxu0 %v445
    %v1027 = vpop.f32.mrb[0].mxu0
    %v1028 = vadd.f32 %v884, %v1027
    %v1029 = vpop.f32.mrb[0].mxu0
    %1030 = vmatprep.mubr.f32.mxu0 %v831
    %1031 = vmatmul.mubr.f32.gmra.mrb[0].mxu0 %v446
    %v1032 = vpop.f32.mrb[0].mxu0
    %v1033 = vadd.f32 %v884, %v1032
    %v1034 = vpop.f32.mrb[0].mxu0
    %1035 = vmatprep.mubr.f32.mxu0 %v832
    %1036 = vmatmul.mubr.f32.gmra.mrb[0].mxu0 %v447
    %v1037 = vpop.f32.mrb[0].mxu0
    %v1038 = vadd.f32 %v884, %v1037
    %v1039 = vpop.f32.mrb[0].mxu0
    %1040 = vmatprep.mubr.f32.mxu0 %v833
    %1041 = vmatmul.mubr.f32.gmra.mrb[0].mxu0 %v448
    %v1042 = vpop.f32.mrb[0].mxu0
    %v1043 = vadd.f32 %v884, %v1042
    %v1044 = vpop.f32.mrb[0].mxu0
    %1045 = vmatprep.mubr.f32.mxu0 %v834
    %1046 = vmatmul.mubr.f32.gmra.mrb[0].mxu0 %v449
    %v1047 = vpop.f32.mrb[0].mxu0
    %v1048 = vadd.f32 %v884, %v1047
    %v1049 = vpop.f32.mrb[0].mxu0
    %1050 = vmatprep.mubr.f32.mxu0 %v835
    %1051 = vmatmul.mubr.f32.gmra.mrb[0].mxu0 %v450
    %v1052 = vpop.f32.mrb[0].mxu0
    %v1053 = vadd.f32 %v884, %v1052
    %v1054 = vpop.f32.mrb[0].mxu0
    %1055 = vmatprep.mubr.f32.mxu0 %v836
    %1056 = vmatmul.mubr.f32.gmra.mrb[0].mxu0 %v451
    %v1057 = vpop.f32.mrb[0].mxu0
    %v1058 = vadd.f32 %v884, %v1057
    %v1059 = vpop.f32.mrb[0].mxu0
    %1060 = vmatprep.mubr.f32.mxu0 %v837
    %1061 = vmatmul.mubr.f32.gmra.mrb[0].mxu0 %v452
    %v1062 = vpop.f32.mrb[0].mxu0
    %v1063 = vadd.f32 %v884, %v1062
    %v1064 = vpop.f32.mrb[0].mxu0
    %1065 = vmatprep.mubr.f32.mxu0 %v838
    %1066 = vmatmul.mubr.f32.gmra.mrb[0].mxu0 %v453
    %v1067 = vpop.f32.mrb[0].mxu0
    %v1068 = vadd.f32 %v884, %v1067
    %v1069 = vpop.f32.mrb[0].mxu0
    %1070 = vmatprep.mubr.f32.mxu0 %v839
    %1071 = vmatmul.mubr.f32.gmra.mrb[0].mxu0 %v454
    %v1072 = vpop.f32.mrb[0].mxu0
    %v1073 = vadd.f32 %v884, %v1072
    %v1074 = vpop.f32.mrb[0].mxu0
    %1075 = vmatprep.mubr.f32.mxu0 %v840
    %1076 = vmatmul.mubr.f32.gmra.mrb[0].mxu0 %v455
    %v1077 = vpop.f32.mrb[0].mxu0
    %v1078 = vadd.f32 %v884, %v1077
    %v1079 = vpop.f32.mrb[0].mxu0
    %1080 = vmatprep.mubr.f32.mxu0 %v841
    %1081 = vmatmul.mubr.f32.gmra.mrb[0].mxu0 %v456
    %v1082 = vpop.f32.mrb[0].mxu0
    %v1083 = vadd.f32 %v884, %v1082
    %v1084 = vpop.f32.mrb[0].mxu0
    %1085 = vmatprep.mubr.f32.mxu0 %v842
    %1086 = vmatmul.mubr.f32.gmra.mrb[0].mxu0 %v457
    %v1087 = vpop.f32.mrb[0].mxu0
    %v1088 = vadd.f32 %v884, %v1087
    %v1089 = vpop.f32.mrb[0].mxu0
    %1090 = vmatprep.mubr.f32.mxu0 %v843
    %1091 = vmatmul.mubr.f32.gmra.mrb[0].mxu0 %v458
    %v1092 = vpop.f32.mrb[0].mxu0
    %v1093 = vadd.f32 %v884, %v1092
    %v1094 = vpop.f32.mrb[0].mxu0
    %1095 = vmatprep.mubr.f32.mxu0 %v844
    %1096 = vmatmul.mubr.f32.gmra.mrb[0].mxu0 %v459
    %v1097 = vpop.f32.mrb[0].mxu0
    %v1098 = vadd.f32 %v884, %v1097
    %v1099 = vpop.f32.mrb[0].mxu0
    %1100 = vmatprep.mubr.f32.mxu0 %v845
    %1101 = vmatmul.mubr.f32.gmra.mrb[0].mxu0 %v460
    %v1102 = vpop.f32.mrb[0].mxu0
    %v1103 = vadd.f32 %v884, %v1102
    %v1104 = vpop.f32.mrb[0].mxu0
    %1105 = vmatprep.mubr.f32.mxu0 %v846
    %1106 = vmatmul.mubr.f32.gmra.mrb[0].mxu0 %v461
    %v1107 = vpop.f32.mrb[0].mxu0
    %v1108 = vadd.f32 %v884, %v1107
    %v1109 = vpop.f32.mrb[0].mxu0
    %1110 = vdwg.mxu0
    %v1111 = vmax.f32 %v953, 0.0
    %v1112 = vmax.f32 %v958, 0.0
    %v1113 = vmax.f32 %v963, 0.0
    %v1114 = vmax.f32 %v968, 0.0
    %v1115 = vmax.f32 %v973, 0.0
    %v1116 = vmax.f32 %v978, 0.0
    %v1117 = vmax.f32 %v983, 0.0
    %v1118 = vmax.f32 %v988, 0.0
    %v1119 = vmax.f32 %v993, 0.0
    %v1120 = vmax.f32 %v998, 0.0
    %v1121 = vmax.f32 %v1003, 0.0
    %v1122 = vmax.f32 %v1008, 0.0
    %v1123 = vmax.f32 %v1013, 0.0
    %v1124 = vmax.f32 %v1018, 0.0
    %v1125 = vmax.f32 %v1023, 0.0
    %v1126 = vmax.f32 %v1028, 0.0
    %v1127 = vmax.f32 %v1033, 0.0
    %v1128 = vmax.f32 %v1038, 0.0
    %v1129 = vmax.f32 %v1043, 0.0
    %v1130 = vmax.f32 %v1048, 0.0
    %v1131 = vmax.f32 %v1053, 0.0
    %v1132 = vmax.f32 %v1058, 0.0
    %v1133 = vmax.f32 %v1063, 0.0
    %v1134 = vmax.f32 %v1068, 0.0
    %v1135 = vmax.f32 %v1073, 0.0
    %v1136 = vmax.f32 %v1078, 0.0
    %v1137 = vmax.f32 %v1083, 0.0
    %v1138 = vmax.f32 %v1088, 0.0
    %v1139 = vmax.f32 %v1093, 0.0
    %v1140 = vmax.f32 %v1098, 0.0
    %v1141 = vmax.f32 %v1103, 0.0
    %v1142 = vmax.f32 %v1108, 0.0
    %1143 = vst [vmem:[%s5] sm:$0xff] %v1111
    %1144 = vst [vmem:[%s5 + $0x8] sm:$0xff] %v1112
    %1145 = vst [vmem:[%s5 + $0x10] sm:$0xff] %v1113
    %1146 = vst [vmem:[%s5 + $0x18] sm:$0xff] %v1114
    %1147 = vst [vmem:[%s5 + $0x20] sm:$0xff] %v1115
    %1148 = vst [vmem:[%s5 + $0x28] sm:$0xff] %v1116
    %1149 = vst [vmem:[%s5 + $0x30] sm:$0xff] %v1117
    %1150 = vst [vmem:[%s5 + $0x38] sm:$0xff] %v1118
    %1151 = vst [vmem:[%s5 + $0x40] sm:$0xff] %v1119
    %1152 = vst [vmem:[%s5 + $0x48] sm:$0xff] %v1120
    %1153 = vst [vmem:[%s5 + $0x50] sm:$0xff] %v1121
    %1154 = vst [vmem:[%s5 + $0x58] sm:$0xff] %v1122
    %1155 = vst [vmem:[%s5 + $0x60] sm:$0xff] %v1123
    %1156 = vst [vmem:[%s5 + $0x68] sm:$0xff] %v1124
    %1157 = vst [vmem:[%s5 + $0x70] sm:$0xff] %v1125
    %1158 = vst [vmem:[%s5 + $0x78] sm:$0xff] %v1126
    %1159 = vst [vmem:[%s5 + $0x80] sm:$0xff] %v1127
    %1160 = vst [vmem:[%s5 + $0x88] sm:$0xff] %v1128
    %1161 = vst [vmem:[%s5 + $0x90] sm:$0xff] %v1129
    %1162 = vst [vmem:[%s5 + $0x98] sm:$0xff] %v1130
    %1163 = vst [vmem:[%s5 + $0xa0] sm:$0xff] %v1131
    %1164 = vst [vmem:[%s5 + $0xa8] sm:$0xff] %v1132
    %1165 = vst [vmem:[%s5 + $0xb0] sm:$0xff] %v1133
    %1166 = vst [vmem:[%s5 + $0xb8] sm:$0xff] %v1134
    %1167 = vst [vmem:[%s5 + $0xc0] sm:$0xff] %v1135
    %1168 = vst [vmem:[%s5 + $0xc8] sm:$0xff] %v1136
    %1169 = vst [vmem:[%s5 + $0xd0] sm:$0xff] %v1137
    %1170 = vst [vmem:[%s5 + $0xd8] sm:$0xff] %v1138
    %1171 = vst [vmem:[%s5 + $0xe0] sm:$0xff] %v1139
    %1172 = vst [vmem:[%s5 + $0xe8] sm:$0xff] %v1140
    %1173 = vst [vmem:[%s5 + $0xf0] sm:$0xff] %v1141
    %1174 = vst [vmem:[%s5 + $0xf8] sm:$0xff] %v1142
    // Predicated region
    $region34: #{forward.1} parent=1 // pred_check
      _
    $region35: #{forward.1} parent=1 // pred_check_branch
      %1176 = sbr.rel (0) target = $region37
    $region36: #{forward.1} parent=1 // pred_region
      _
    $region37: #{forward.1} parent=1 // pred_fallthru
      _
    // Predicated region
    $region38: #{forward.1} parent=1 // pred_check
      _
    $region39: #{forward.1} parent=1 // pred_check_branch
      %1178 = sbr.rel (0) target = $region41
    $region40: #{forward.1} parent=1 // pred_region
      _
    $region41: #{forward.1} parent=1 // pred_fallthru
      _
    %1179 = vsyncpa [#allocation3], 1
    %1180 = vsyncpa [#allocation5], 1

</llo_original>
